<compile_context>
chip_gen: v7x
topology: tpu7x:2x2x1
jax: 0.10.0
libtpu: 0.0.40
codegen_flags: <defaults>
</compile_context>

<pallas_src>
import functools

import jax
import jax.numpy as jnp
from jax.experimental import pallas as pl
from jax.experimental.pallas import tpu as pltpu


def _softplus(x):
    # matches torch.nn.functional.softplus (threshold = 20)
    return jnp.where(x > 20.0, x, jnp.log1p(jnp.exp(jnp.minimum(x, 20.0))))


def _vmem_budget_bytes():
    """Per-generation budget for the double-buffered input working set."""
    try:
        kind = jax.devices()[0].device_kind.lower()
    except Exception:
        kind = ""
    if "v5 lite" in kind or "v5e" in kind or "v5lite" in kind:
        return 10 * 1024 * 1024
    # v6e / v7x (and a safe default): keep well under v7x's 64 MiB VMEM.
    return 24 * 1024 * 1024


def _lane_dense_2d(x):
    """Flatten a tiny tensor into a lane-dense 2-D array (last dim 128 if possible)."""
    x = jnp.ravel(x)
    n = x.shape[0]
    if n >= 128 and n % 128 == 0:
        return x.reshape(n // 128, 128)
    return x.reshape(1, n)


# -----------------------------------------------------------------------------
# Masked L2 distance (MaskedDistance, distance_type='L2') fused with the
# landcover / negative-prediction mask construction from VariationnalLoss.
# -----------------------------------------------------------------------------
def _masked_l2_kernel(*refs, has_mask, min_lc, max_lc, tile_t, sub):
    if has_mask:
        preds_ref, targs_ref, masks_ref, lc_ref, sq_ref, cnt_ref = refs
    else:
        preds_ref, targs_ref, lc_ref, sq_ref, cnt_ref = refs
        masks_ref = None

    t_idx = pl.program_id(1)

    @pl.when(t_idx == 0)
    def _():
        sq_ref[...] = jnp.zeros_like(sq_ref)
        cnt_ref[...] = jnp.zeros_like(cnt_ref)

    p = preds_ref[...].astype(jnp.float32)        # (1, tile_t, L)
    t = targs_ref[...].astype(jnp.float32)        # (1, tile_t, L)
    lc = lc_ref[...].astype(jnp.float32)          # (1, 1, L)

    # Torch semantics fold to a single boolean mask:
    #   m = (masks != 0) & (min_lc <= lc <= max_lc) & (preds >= 0)
    lc_ok = jnp.logical_and(lc >= min_lc, lc <= max_lc)          # (1, 1, L)
    m = jnp.logical_and(lc_ok, p >= 0.0)                         # broadcast over T
    if has_mask:
        m = jnp.logical_and(m, masks_ref[...] != 0)

    # preds is never NaN inside the mask (NaN >= 0 is False), so only the
    # target needs NaN scrubbing; one select per stream.
    t_clean = jnp.where(jnp.isnan(t), 0.0, t)
    d = jnp.where(m, p - t_clean, 0.0)
    dd = d * d
    mc = m.astype(jnp.float32)

    def fold(x):
        # (1, tile_t, L) -> (1, sub, L); sublane-group adds only (VPU, no XLU)
        if sub == tile_t:
            return x
        if sub == 8 and tile_t % 8 == 0:
            acc = x[:, 0:8, :]
            for g in range(1, tile_t // 8):
                acc = acc + x[:, g * 8:(g + 1) * 8, :]
            return acc
        # general fallback (rare): single sublane reduction per step
        return jnp.sum(x, axis=1, keepdims=True)

    sq_ref[...] += fold(dd)      # partial SSE per (b, sublane-slot, lane)
    cnt_ref[...] += fold(mc)     # partial (mask > 0) count


def masked_l2_distance(preds3d, targs3d, masks3d, lc3d, min_lc, max_lc):
    """preds3d/targs3d[/masks3d]: [B, T, L]; lc3d: [B, 1, L]."""
    B, T, L = preds3d.shape
    has_mask = masks3d is not None

    bytes_per_row = L * (preds3d.dtype.itemsize + targs3d.dtype.itemsize
                         + (masks3d.dtype.itemsize if has_mask else 0))
    budget = _vmem_budget_bytes()
    max_rows = max(1, budget // (2 * bytes_per_row))   # 2x = double buffering

    # time-tile candidates: multiples of 8 dividing T, plus full T
    cands = sorted({d for d in range(8, T, 8) if T % d == 0} | {T}, reverse=True)
    tile_t = next((c for c in cands if c <= max_rows), cands[-1])
    # TODO(synk): if H*W is very large and T has no usable divisor, the lane
    # dimension should be tiled as well (extra grid axis); not needed here.

    if tile_t % 8 == 0:
        sub = 8
    elif tile_t <= 8:
        sub = tile_t
    else:
        sub = 1

    kern = functools.partial(_masked_l2_kernel, has_mask=has_mask,
                             min_lc=float(min_lc), max_lc=float(max_lc),
                             tile_t=tile_t, sub=sub)

    img_spec = pl.BlockSpec((1, tile_t, L), lambda b, t: (b, t, 0))
    in_specs = [img_spec, img_spec]
    args = [preds3d, targs3d]
    if has_mask:
        in_specs.append(pl.BlockSpec((1, tile_t, L), lambda b, t: (b, t, 0)))
        args.append(masks3d)
    # landcover block is constant across the time axis -> re-used, never broadcast
    in_specs.append(pl.BlockSpec((1, 1, L), lambda b, t: (b, 0, 0)))
    args.append(lc3d)

    out_shape = (jax.ShapeDtypeStruct((B, sub, L), jnp.float32),
                 jax.ShapeDtypeStruct((B, sub, L), jnp.float32))
    out_specs = [pl.BlockSpec((1, sub, L), lambda b, t: (b, 0, 0)),
                 pl.BlockSpec((1, sub, L), lambda b, t: (b, 0, 0))]

    # working-set estimate -> vmem limit (capped below v7x's 64 MiB VMEM)
    ws = (2 * bytes_per_row * tile_t            # double-buffered input streams
          + 2 * L * lc3d.dtype.itemsize         # landcover buffers
          + 2 * 2 * sub * L * 4)                # resident output accumulators
    vmem_limit = int(min(max(2 * ws + (8 << 20), 32 << 20), 48 << 20))

    sq, cnt = pl.pallas_call(
        kern,
        out_shape=out_shape,
        grid_spec=pltpu.PrefetchScalarGridSpec(
            num_scalar_prefetch=0,
            grid=(B, T // tile_t),
            in_specs=in_specs,
            out_specs=out_specs,
        ),
        compiler_params=pltpu.CompilerParams(
            dimension_semantics=("parallel", "arbitrary"),
            vmem_limit_bytes=vmem_limit),
    )(*args)

    sq_tot = jnp.sum(sq)
    cnt_tot = jnp.sum(cnt)
    # F.mse_loss(..., reduction='sum') + 1e-6 / ((mask > 0).sum() + 1)
    # (parenthesization matches the original torch code verbatim)
    return sq_tot + 1e-6 / (cnt_tot + 1.0)


# -----------------------------------------------------------------------------
# One fused kernel for all tiny auxiliary terms:
#   * KL(N(loc, softplus(raw)+eps) || N(0, 1)).sum()            (state_params)
#   * KL(N_q || N_p).sum() for each stacked (q, p) raw pair     (infer_* terms)
#   * sum of per-row L2 norms of the residual updates
# -----------------------------------------------------------------------------
def _aux_terms_kernel(*refs, has_state, n_pairs, has_updates):
    idx = 0

    def nxt():
        nonlocal idx
        r = refs[idx]
        idx += 1
        return r

    s_loc_ref = nxt() if has_state else None
    s_raw_ref = nxt() if has_state else None
    if n_pairs:
        q_loc_ref, q_raw_ref, p_loc_ref, p_raw_ref = nxt(), nxt(), nxt(), nxt()
    upd_ref = nxt() if has_updates else None
    state_out = nxt() if has_state else None
    pair_outs = [nxt() for _ in range(n_pairs)]
    res_out = nxt() if has_updates else None

    if has_state:
        loc = s_loc_ref[...].astype(jnp.float32)
        scale = _softplus(s_raw_ref[...].astype(jnp.float32)) + 1e-8
        var = scale * scale
        kl = 0.5 * (var + loc * loc - 1.0 - jnp.log(var))
        state_out[...] = jnp.reshape(jnp.sum(kl), (1, 1))

    for i in range(n_pairs):
        ql = q_loc_ref[i].astype(jnp.float32)
        qs = _softplus(q_raw_ref[i].astype(jnp.float32)) + 1e-8
        ploc = p_loc_ref[i].astype(jnp.float32)
        ps = _softplus(p_raw_ref[i].astype(jnp.float32)) + 1e-8
        ratio = qs / ps
        var_ratio = ratio * ratio
        dloc = (ql - ploc) / ps
        t1 = dloc * dloc
        kl = 0.5 * (var_ratio + t1 - 1.0 - jnp.log(var_ratio))
        pair_outs[i][...] = jnp.reshape(jnp.sum(kl), (1, 1))

    if has_updates:
        u = upd_ref[...].astype(jnp.float32)
        nrm = jnp.sqrt(jnp.sum(u * u, axis=-1, keepdims=True))
        res_out[...] = jnp.reshape(jnp.sum(nrm), (1, 1))


def compute_aux_terms(state_params=None, qp_pairs=None, updates=None):
    """Returns (kld_state_mean | None, [kld_infer_means], l2_res_mean | None)."""
    has_state = state_params is not None
    n_pairs = len(qp_pairs) if qp_pairs else 0
    has_updates = updates is not None
    if not (has_state or n_pairs or has_updates):
        return None, [], None

    inputs = []
    state_numel = pair_numel = n_rows = 1

    if has_state:
        d = state_params.shape[-1] // 2
        loc = _lane_dense_2d(state_params[..., :d])
        raw = _lane_dense_2d(state_params[..., d:])
        state_numel = loc.size
        inputs += [loc, raw]
    if n_pairs:
        shapes = ({tuple(q.shape) for q, _ in qp_pairs}
                  | {tuple(p.shape) for _, p in qp_pairs})
        # TODO(synk): heterogeneous q/p pair shapes would need separate calls.
        assert len(shapes) == 1, "all infer q/p raw params must share a shape"
        q_loc = jnp.stack([_lane_dense_2d(q[..., :q.shape[-1] // 2]) for q, _ in qp_pairs])
        q_raw = jnp.stack([_lane_dense_2d(q[..., q.shape[-1] // 2:]) for q, _ in qp_pairs])
        p_loc = jnp.stack([_lane_dense_2d(p[..., :p.shape[-1] // 2]) for _, p in qp_pairs])
        p_raw = jnp.stack([_lane_dense_2d(p[..., p.shape[-1] // 2:]) for _, p in qp_pairs])
        pair_numel = q_loc.shape[1] * q_loc.shape[2]
        inputs += [q_loc, q_raw, p_loc, p_raw]
    if has_updates:
        u = jnp.moveaxis(updates, 2, -1)          # torch.norm(..., dim=2)
        u2d = u.reshape(-1, u.shape[-1])
        n_rows = u2d.shape[0]
        inputs.append(u2d)

    out_shapes = []
    if has_state:
        out_shapes.append(jax.ShapeDtypeStruct((1, 1), jnp.float32))
    out_shapes += [jax.ShapeDtypeStruct((1, 1), jnp.float32) for _ in range(n_pairs)]
    if has_updates:
        out_shapes.append(jax.ShapeDtypeStruct((1, 1), jnp.float32))

    kern = functools.partial(_aux_terms_kernel, has_state=has_state,
                             n_pairs=n_pairs, has_updates=has_updates)
    outs = pl.pallas_call(
        kern,
        out_shape=tuple(out_shapes),
        in_specs=[pl.BlockSpec(memory_space=pltpu.MemorySpace.VMEM)] * len(inputs),
        out_specs=tuple(pl.BlockSpec(memory_space=pltpu.MemorySpace.VMEM)
                        for _ in out_shapes),
    )(*inputs)
    if not isinstance(outs, (tuple, list)):
        outs = (outs,)

    oi = 0
    kld_state = None
    if has_state:
        kld_state = outs[oi][0, 0] / state_numel
        oi += 1
    kld_infers = [outs[oi + i][0, 0] / pair_numel for i in range(n_pairs)]
    oi += n_pairs
    l2_res = outs[oi][0, 0] / n_rows if has_updates else None
    return kld_state, kld_infers, l2_res


# -----------------------------------------------------------------------------
# VariationnalLoss (forward only)
# -----------------------------------------------------------------------------
class VariationnalLoss:
    def __init__(self, setting):
        args = dict(setting['args'])
        self.distance_type = args.get('distance_type', 'L2')
        assert self.distance_type == 'L2', 'only the L2 masked distance is implemented'
        self.scaler = setting.get('dist_scale', 1)  # unused in forward (same as torch)
        self.min_lc = setting['min_lc']
        self.max_lc = setting['max_lc']
        # TODO(synk): WeightShedule is not defined in the reference source; stand in
        # with a constant weight of 1.0 whenever a schedule is configured.
        self.lambda_state = (lambda step: 1.0) if 'state_shedule' in setting else None
        self.lambda_infer = (lambda step: 1.0) if 'inference_shedule' in setting else None
        self.lambda_l2_res = (lambda step: 1.0) if 'residuals_shedule' in setting else None

    def __call__(self, preds, batch, aux, current_step=None):
        logs = {}
        T = preds.shape[1]
        if 'target' in batch:
            targs = batch['target'][:, -T:, ...]
        else:
            targs = batch['dynamic'][0][:, -T:, ...]
            if preds.shape[2] == 1:
                targs = targs[:, :, 0:1, ...]
        if len(batch['dynamic_mask']) > 0:
            masks = batch['dynamic_mask'][0][:, -T:, ...]
            if masks is not None and masks.shape[2] > 1:
                masks = masks[:, :, 0:1, ...]
        else:
            masks = None
        lc = batch['landcover']                                  # [B, 1, H, W]

        B, _, C, H, W = preds.shape
        assert C == 1, 'kernel layout assumes a single channel (NDVI-style preds)'
        assert targs.shape == preds.shape
        L = H * W

        preds3d = preds.reshape(B, T, L)
        targs3d = targs.reshape(B, T, L)
        masks3d = None if masks is None else masks.reshape(B, T, L)
        lc3d = lc.reshape(B, 1, L)

        loss = masked_l2_distance(preds3d, targs3d, masks3d, lc3d,
                                  self.min_lc, self.max_lc)
        logs['distance'] = loss

        state_params = aux.get('state_params', None)
        qp_pairs = None
        if set(['infer_q_params', 'infer_p_params']).issubset(set(aux)):
            assert len(aux['infer_q_params']) == len(aux['infer_p_params'])
            qp_pairs = list(zip(aux['infer_q_params'], aux['infer_p_params']))
        updates = aux.get('updates', None)

        kld_state, kld_infers, l2_res = compute_aux_terms(state_params, qp_pairs, updates)

        if kld_state is not None:
            lambda_state = self.lambda_state(current_step)
            loss = loss + lambda_state * kld_state
            logs['kld_state'] = kld_state
            logs['lambda_kld_state'] = lambda_state
        if kld_infers:
            lambda_infer = self.lambda_infer(current_step)
            for i, kld_infer in enumerate(kld_infers):
                loss = loss + lambda_infer * kld_infer
                logs['kld_infer_{}'.format(i)] = kld_infer
            logs['lambda_kld_infer'] = lambda_infer
        if l2_res is not None:
            lambda_l2_res = self.lambda_l2_res(current_step)
            loss = loss + lambda_l2_res * l2_res
            logs['l2_res'] = l2_res
            logs['lambda_l2_res'] = lambda_l2_res

        logs['loss'] = loss
        return loss, logs


# -----------------------------------------------------------------------------
# Pure-JAX reference of the same forward (sanity check)
# -----------------------------------------------------------------------------
def _reference_loss(preds, batch, aux, min_lc, max_lc):
    T = preds.shape[1]
    targs = batch['target'][:, -T:]
    masks = batch['dynamic_mask'][0][:, -T:]
    lc = batch['landcover']
    lc_mask = jnp.logical_and(lc >= min_lc, lc <= max_lc).astype(jnp.float32)
    lc_mask = jnp.broadcast_to(lc_mask[:, None], masks.shape)
    m = jnp.where(masks != 0, lc_mask, masks)
    m = jnp.where(m != 0, (preds >= 0).astype(jnp.float32), m)
    tm = jnp.where(m != 0, targs, 0.0)
    pm = jnp.where(m != 0, preds, 0.0)
    pm = jnp.where(jnp.isnan(pm), 0.0, pm)
    tm = jnp.where(jnp.isnan(tm), 0.0, tm)
    loss = jnp.sum((pm - tm) ** 2) + 1e-6 / (jnp.sum(m > 0).astype(jnp.float32) + 1.0)

    sp = aux['state_params']
    d = sp.shape[-1] // 2
    loc, raw_scale = sp[..., :d], sp[..., d:]
    scale = jax.nn.softplus(raw_scale) + 1e-8
    loss = loss + jnp.mean(0.5 * (scale ** 2 + loc ** 2 - 1.0 - jnp.log(scale ** 2)))

    for q, p in zip(aux['infer_q_params'], aux['infer_p_params']):
        ql, qs = q[..., :d], jax.nn.softplus(q[..., d:]) + 1e-8
        pl_, ps = p[..., :d], jax.nn.softplus(p[..., d:]) + 1e-8
        vr = (qs / ps) ** 2
        t1 = ((ql - pl_) / ps) ** 2
        loss = loss + jnp.mean(0.5 * (vr + t1 - 1.0 - jnp.log(vr)))

    loss = loss + jnp.mean(jnp.linalg.norm(aux['updates'], axis=2))
    return loss


if __name__ == "__main__":
    key = jax.random.PRNGKey(0)
    B, T_full, T, C, H, W = 2, 6, 4, 1, 16, 16
    D_latent, D_update = 32, 32

    ks = jax.random.split(key, 10)
    preds = jax.random.uniform(ks[0], (B, T, C, H, W), jnp.float32, -0.2, 1.0)
    target = jax.random.uniform(ks[1], (B, T_full, C, H, W), jnp.float32, 0.0, 1.0)
    # inject some NaNs into the target to exercise the isnan handling
    nan_mask = jax.random.bernoulli(ks[2], 0.05, (B, T_full, C, H, W))
    target = jnp.where(nan_mask, jnp.nan, target)
    dyn_mask = jax.random.bernoulli(ks[3], 0.7, (B, T_full, C, H, W)).astype(jnp.float32)
    landcover = jnp.floor(jax.random.uniform(ks[4], (B, 1, H, W), jnp.float32, 0.0, 60.0))

    state_params = jax.random.normal(ks[5], (B, T, 2 * D_latent), jnp.float32)
    infer_q = [jax.random.normal(ks[6], (B, T, 2 * D_latent), jnp.float32),
               jax.random.normal(ks[7], (B, T, 2 * D_latent), jnp.float32)]
    infer_p = [jax.random.normal(ks[8], (B, T, 2 * D_latent), jnp.float32),
               jax.random.normal(ks[9], (B, T, 2 * D_latent), jnp.float32)]
    updates = jax.random.normal(jax.random.fold_in(key, 42), (B, T, D_update), jnp.float32)

    batch = {'target': target, 'dynamic_mask': [dyn_mask], 'landcover': landcover}
    aux = {'state_params': state_params, 'infer_q_params': infer_q,
           'infer_p_params': infer_p, 'updates': updates}

    setting = {'args': {'distance_type': 'L2'}, 'min_lc': 10, 'max_lc': 40,
               'state_shedule': {}, 'inference_shedule': {}, 'residuals_shedule': {}}
    loss_fn = VariationnalLoss(setting)

    loss, logs = loss_fn(preds, batch, aux, current_step=100)
    loss = jax.block_until_ready(loss)

    ref = jax.block_until_ready(_reference_loss(preds, batch, aux, 10, 40))
    assert jnp.allclose(loss, ref, rtol=1e-4, atol=1e-3), (loss, ref)
    print("KERNEL_OK")
</pallas_src>

<mosaic_0001>
module attributes {stable_mosaic.version = 11 : i64} {
  func.func @_masked_l2_kernel(%arg0: i32, %arg1: i32, %arg2: memref<1x4x256xf32, #tpu.memory_space<vmem>>, %arg3: memref<1x4x256xf32, #tpu.memory_space<vmem>>, %arg4: memref<1x4x256xf32, #tpu.memory_space<vmem>>, %arg5: memref<1x1x256xf32, #tpu.memory_space<vmem>>, %arg6: memref<1x4x256xf32, #tpu.memory_space<vmem>>, %arg7: memref<1x4x256xf32, #tpu.memory_space<vmem>>) attributes {dimension_semantics = [#tpu.dimension_semantics<parallel>, #tpu.dimension_semantics<arbitrary>], iteration_bounds = array<i64: 2, 1>, scalar_prefetch = 0 : i64, scratch_operands = 0 : i64, tpu.core_type = #tpu.core_type<tc>, window_params = [{transform_indices = @transform_0, window_bounds = array<i64: 1, 4, 256>}, {transform_indices = @transform_1, window_bounds = array<i64: 1, 4, 256>}, {transform_indices = @transform_2, window_bounds = array<i64: 1, 4, 256>}, {transform_indices = @transform_3, window_bounds = array<i64: 1, 1, 256>}, {transform_indices = @transform_4, window_bounds = array<i64: 1, 4, 256>}, {transform_indices = @transform_5, window_bounds = array<i64: 1, 4, 256>}]} {
    %c0_i32 = arith.constant 0 : i32
    %0 = arith.cmpi eq, %arg1, %c0_i32 : i32
    %1 = arith.extui %0 : i1 to i32
    %c0_i32_0 = arith.constant 0 : i32
    %2 = arith.cmpi ne, %1, %c0_i32_0 : i32
    scf.if %2 {
      %cst_29 = arith.constant 0.000000e+00 : f32
      %34 = vector.broadcast %cst_29 : f32 to vector<1x4x256xf32>
      %c0_30 = arith.constant 0 : index
      %c0_31 = arith.constant 0 : index
      %c0_32 = arith.constant 0 : index
      %35 = vector.load %arg6[%c0_30, %c0_31, %c0_32] : memref<1x4x256xf32, #tpu.memory_space<vmem>>, vector<1x4x256xf32>
      tpu.vector_store %arg6[%c0_30, %c0_31, %c0_32], %34 {strides = array<i32>} : memref<1x4x256xf32, #tpu.memory_space<vmem>>, vector<1x4x256xf32>,
      %cst_33 = arith.constant 0.000000e+00 : f32
      %36 = vector.broadcast %cst_33 : f32 to vector<1x4x256xf32>
      %c0_34 = arith.constant 0 : index
      %c0_35 = arith.constant 0 : index
      %c0_36 = arith.constant 0 : index
      %37 = vector.load %arg7[%c0_34, %c0_35, %c0_36] : memref<1x4x256xf32, #tpu.memory_space<vmem>>, vector<1x4x256xf32>
      tpu.vector_store %arg7[%c0_34, %c0_35, %c0_36], %36 {strides = array<i32>} : memref<1x4x256xf32, #tpu.memory_space<vmem>>, vector<1x4x256xf32>,
    } else {
    }
    %c0 = arith.constant 0 : index
    %c0_1 = arith.constant 0 : index
    %c0_2 = arith.constant 0 : index
    %3 = vector.load %arg2[%c0, %c0_1, %c0_2] : memref<1x4x256xf32, #tpu.memory_space<vmem>>, vector<1x4x256xf32>
    %c0_3 = arith.constant 0 : index
    %c0_4 = arith.constant 0 : index
    %c0_5 = arith.constant 0 : index
    %4 = vector.load %arg3[%c0_3, %c0_4, %c0_5] : memref<1x4x256xf32, #tpu.memory_space<vmem>>, vector<1x4x256xf32>
    %c0_6 = arith.constant 0 : index
    %c0_7 = arith.constant 0 : index
    %c0_8 = arith.constant 0 : index
    %5 = vector.load %arg5[%c0_6, %c0_7, %c0_8] : memref<1x1x256xf32, #tpu.memory_space<vmem>>, vector<1x1x256xf32>
    %cst = arith.constant 1.000000e+01 : f32
    %6 = vector.broadcast %cst : f32 to vector<1x1x256xf32>
    %7 = arith.cmpf oge, %5, %6 : vector<1x1x256xf32>
    %cst_9 = arith.constant 4.000000e+01 : f32
    %8 = vector.broadcast %cst_9 : f32 to vector<1x1x256xf32>
    %9 = arith.cmpf ole, %5, %8 : vector<1x1x256xf32>
    %10 = arith.andi %7, %9 : vector<1x1x256xi1>
    %cst_10 = arith.constant 0.000000e+00 : f32
    %11 = vector.broadcast %cst_10 : f32 to vector<1x4x256xf32>
    %12 = arith.cmpf oge, %3, %11 : vector<1x4x256xf32>
    %13 = vector.broadcast %10 : vector<1x1x256xi1> to vector<1x4x256xi1>
    %14 = arith.andi %13, %12 : vector<1x4x256xi1>
    %c0_11 = arith.constant 0 : index
    %c0_12 = arith.constant 0 : index
    %c0_13 = arith.constant 0 : index
    %15 = vector.load %arg4[%c0_11, %c0_12, %c0_13] : memref<1x4x256xf32, #tpu.memory_space<vmem>>, vector<1x4x256xf32>
    %cst_14 = arith.constant 0.000000e+00 : f32
    %16 = vector.broadcast %cst_14 : f32 to vector<1x4x256xf32>
    %17 = arith.cmpf one, %15, %16 : vector<1x4x256xf32>
    %18 = arith.andi %14, %17 : vector<1x4x256xi1>
    %19 = arith.cmpf one, %4, %4 : vector<1x4x256xf32>
    %cst_15 = arith.constant 0.000000e+00 : f32
    %20 = vector.broadcast %cst_15 : f32 to vector<1x4x256xf32>
    %21 = arith.select %19, %20, %4 : vector<1x4x256xi1>, vector<1x4x256xf32>
    %22 = arith.subf %3, %21 : vector<1x4x256xf32>
    %cst_16 = arith.constant 0.000000e+00 : f32
    %23 = vector.broadcast %cst_16 : f32 to vector<1x4x256xf32>
    %24 = arith.select %18, %22, %23 : vector<1x4x256xi1>, vector<1x4x256xf32>
    %25 = arith.mulf %24, %24 : vector<1x4x256xf32>
    %26 = arith.extui %18 : vector<1x4x256xi1> to vector<1x4x256xi32>
    %27 = arith.sitofp %26 : vector<1x4x256xi32> to vector<1x4x256xf32>
    %c0_17 = arith.constant 0 : index
    %c0_18 = arith.constant 0 : index
    %c0_19 = arith.constant 0 : index
    %28 = vector.load %arg6[%c0_17, %c0_18, %c0_19] : memref<1x4x256xf32, #tpu.memory_space<vmem>>, vector<1x4x256xf32>
    %29 = arith.addf %28, %25 : vector<1x4x256xf32>
    %c0_20 = arith.constant 0 : index
    %c0_21 = arith.constant 0 : index
    %c0_22 = arith.constant 0 : index
    %30 = vector.load %arg6[%c0_20, %c0_21, %c0_22] : memref<1x4x256xf32, #tpu.memory_space<vmem>>, vector<1x4x256xf32>
    tpu.vector_store %arg6[%c0_20, %c0_21, %c0_22], %29 {strides = array<i32>} : memref<1x4x256xf32, #tpu.memory_space<vmem>>, vector<1x4x256xf32>,
    %c0_23 = arith.constant 0 : index
    %c0_24 = arith.constant 0 : index
    %c0_25 = arith.constant 0 : index
    %31 = vector.load %arg7[%c0_23, %c0_24, %c0_25] : memref<1x4x256xf32, #tpu.memory_space<vmem>>, vector<1x4x256xf32>
    %32 = arith.addf %31, %27 : vector<1x4x256xf32>
    %c0_26 = arith.constant 0 : index
    %c0_27 = arith.constant 0 : index
    %c0_28 = arith.constant 0 : index
    %33 = vector.load %arg7[%c0_26, %c0_27, %c0_28] : memref<1x4x256xf32, #tpu.memory_space<vmem>>, vector<1x4x256xf32>
    tpu.vector_store %arg7[%c0_26, %c0_27, %c0_28], %32 {strides = array<i32>} : memref<1x4x256xf32, #tpu.memory_space<vmem>>, vector<1x4x256xf32>,
    return
  }
  func.func @transform_0(%arg0: i32, %arg1: i32) -> (i32, i32, i32) {
    %c0_i32 = arith.constant 0 : i32
    %c0_i32_0 = arith.constant 0 : i32
    return %arg0, %arg1, %c0_i32 : i32, i32, i32
  }
  func.func @transform_1(%arg0: i32, %arg1: i32) -> (i32, i32, i32) {
    %c0_i32 = arith.constant 0 : i32
    %c0_i32_0 = arith.constant 0 : i32
    return %arg0, %arg1, %c0_i32 : i32, i32, i32
  }
  func.func @transform_2(%arg0: i32, %arg1: i32) -> (i32, i32, i32) {
    %c0_i32 = arith.constant 0 : i32
    %c0_i32_0 = arith.constant 0 : i32
    return %arg0, %arg1, %c0_i32 : i32, i32, i32
  }
  func.func @transform_3(%arg0: i32, %arg1: i32) -> (i32, i32, i32) {
    %c0_i32 = arith.constant 0 : i32
    %c0_i32_0 = arith.constant 0 : i32
    %c0_i32_1 = arith.constant 0 : i32
    return %arg0, %c0_i32, %c0_i32_0 : i32, i32, i32
  }
  func.func @transform_4(%arg0: i32, %arg1: i32) -> (i32, i32, i32) {
    %c0_i32 = arith.constant 0 : i32
    %c0_i32_0 = arith.constant 0 : i32
    %c0_i32_1 = arith.constant 0 : i32
    return %arg0, %c0_i32, %c0_i32_0 : i32, i32, i32
  }
  func.func @transform_5(%arg0: i32, %arg1: i32) -> (i32, i32, i32) {
    %c0_i32 = arith.constant 0 : i32
    %c0_i32_0 = arith.constant 0 : i32
    %c0_i32_1 = arith.constant 0 : i32
    return %arg0, %c0_i32, %c0_i32_0 : i32, i32, i32
  }
}

</mosaic_0001>

<llo_original>
// kernel: tpu_custom_call.1
$region0: #{tpu_custom_call.1}
  #allocation0 [shape = 'u32[]', space=smem, size = 0x4, offset = 0x4, fixed_abs, tag = 'smem constant byte address 0x4 - core index']
  #allocation1 [shape = 'u32[144,128]{1,0:T(1,128)}', space=vmem, size = 0x12000, scoped, tag = 'internal scratch']
  %s0 = inlined_call_operand.hbm [shape: f32[2,4,256], index: 0, kind: input, shape index: {}]
  %s1 = inlined_call_operand.hbm [shape: f32[2,4,256], index: 1, kind: input, shape index: {}]
  %s2 = inlined_call_operand.hbm [shape: f32[2,4,256], index: 2, kind: input, shape index: {}]
  %s3 = inlined_call_operand.vmem [shape: f32[2,1,256], index: 3, kind: input, shape index: {}]
  %s4 = inlined_call_operand.hbm [shape: f32[2,4,256], index: 4, kind: output, shape index: {0}]
  %s5 = inlined_call_operand.hbm [shape: f32[2,4,256], index: 5, kind: output, shape index: {1}]
  %6 = xla_tuple %s4, %s5
  %s7 = sld [smem:[#allocation0]]
  $region73: #{tpu_custom_call.1} parent=0
    _
  %s9 = ssub.s32 1, %s7
  %s10 = scalar_select 0, %s9, %s7
  $region1: #{tpu_custom_call.1} parent=0
    #allocation2 [shape = 'u8[8192]{0}', space=vmem, size = 0x2000, scoped, tag = 'input window, operand 0']
    #allocation3 [shape = 's32[2]{0}', space=sflag, size = 0x8, scoped, tag = 'scoped memory for tpu_custom_call.1']
    #allocation4 [shape = 's32[2]{0}', space=sflag, size = 0x8, scoped, tag = 'scoped memory for tpu_custom_call.1']
    #allocation5 [shape = 'u8[8192]{0}', space=vmem, size = 0x2000, scoped, tag = 'input window, operand 1']
    #allocation6 [shape = 's32[2]{0}', space=sflag, size = 0x8, scoped, tag = 'scoped memory for tpu_custom_call.1']
    #allocation7 [shape = 'u8[8192]{0}', space=vmem, size = 0x2000, scoped, tag = 'input window, operand 2']
    #allocation8 [shape = 'u8[8192]{0}', space=vmem, size = 0x2000, scoped, tag = 'output window, operand 0']
    #allocation9 [shape = 'u8[8192]{0}', space=vmem, size = 0x2000, scoped, tag = 'output window, operand 1']
    #allocation10 [shape = 's32[2]{0}', space=sflag, size = 0x8, scoped, tag = 'scoped memory for tpu_custom_call.1']
    %11 = vsyncpa [#allocation3], 0
    %s12 = scalar_lea.sflag [#allocation3], 1
    %13 = vsyncpa %s12, 0
    %14 = vsyncpa [#allocation6], 0
    %s15 = scalar_lea.sflag [#allocation6], 1
    %16 = vsyncpa %s15, 0
    %17 = vsyncpa [#allocation4], 0
    %s18 = scalar_lea.sflag [#allocation4], 1
    %19 = vsyncpa %s18, 0
    %20 = vsyncpa [#allocation10], 0
    %s21 = scalar_lea.sflag [#allocation10], 1
    %22 = vsyncpa %s21, 0
    loop: start=0, step=1, limit=4
    $region2: #{tpu_custom_call.1} parent=1 // loop_pre_header
      _
    $region3: #{tpu_custom_call.1} parent=1 // loop_header
      %s24 = sphi 0, %s28
      %p25 = scmp.ge.s32.totalorder %s24, 4
      %s31 = sphi 0, %s43
      %s32 = sphi 0, %s39
      %s33 = sphi 0, %s31
      %s34 = sphi 0, %s32
      %s35 = sphi 0, %s33
      %s36 = sphi 0, %s34
      %s48 = sphi 0, %s50
      %s51 = sphi 0, %s48
      %s52 = sphi 0, %s51
      %s68 = sphi 0, %s52
      %s76 = sphi 0, %s78
      %s79 = sphi 0, %s76
      %s80 = sphi 0, %s79
      %s96 = sphi 0, %s80
      %s104 = sphi 0, %s106
      %s107 = sphi 0, %s104
      %s108 = sphi 0, %s107
      %s124 = sphi 0, %s108
      %s130 = sphi 0, %s132
      %s133 = sphi 0, %s130
      %s134 = sphi 0, %s133
      %s150 = sphi 0, %s134
      %s156 = sphi 0, %s158
      %s159 = sphi 0, %s156
      %s160 = sphi 0, %s159
      %s176 = sphi 0, %s160
      %s182 = sphi 0, %s184
      %s185 = sphi 0, %s182
      %s186 = sphi 0, %s185
      %s202 = sphi 0, %s186
    $region4: #{tpu_custom_call.1} parent=1 // loop_header_branch
      %27 = sbr.rel (%p25) target = $region8
    $region5: #{tpu_custom_call.1} parent=1 // loop_body
      %s29 = ssub.s32 %s24, 1
      %s30 = ssub.s32 %s24, 2
      %s37 = sadd.s32 1, %s32
      %p38 = scmp.ge.s32.totalorder %s37, 1
      %s39 = scalar_select %p38, 0, %s37
      %s40 = sadd.s32 1, %s31
      %s41 = scalar_select %p38, %s40, %s31
      %p42 = scmp.ge.s32.totalorder %s41, 2
      %s43 = scalar_select %p42, 0, %s41
      %s44 = ssub.s32 %s31, %s43
      %s45 = ssub.s32 %s32, %s39
      %s46 = sor.u32 %s44, %s45
      %p47 = scmp.eq.s32.totalorder %s46, 0
      %s49 = sadd.s32 %s48, 1
      %s50 = scalar_select %p47, %s48, %s49
      %p53 = pneg %p47
      %p54 = scmp.eq.s32.totalorder %s24, 1
      %p55 = por %p53, %p54
      %p56 = scmp.ne.s32.totalorder %s48, %s51
      %p57 = scmp.eq.s32.totalorder %s24, 0
      %p58 = por %p56, %p57
      %p59 = scmp.ne.s32.totalorder %s48, %s51
      %p60 = scmp.eq.s32.totalorder %s29, 1
      %p61 = por %p59, %p60
      %p62 = scmp.ne.s32.totalorder %s51, %s52
      %p63 = scmp.eq.s32.totalorder %s29, 0
      %p64 = por %p62, %p63
      %p65 = scmp.ne.s32.totalorder %s51, %s52
      %p66 = scmp.eq.s32.totalorder %s30, 1
      %p67 = por %p65, %p66
      %p69 = scmp.ne.s32.totalorder %s52, %s68
      %p70 = scmp.eq.s32.totalorder %s30, 0
      %p71 = por %p69, %p70
      %s72 = ssub.s32 %s31, %s43
      %s73 = ssub.s32 %s32, %s39
      %s74 = sor.u32 %s72, %s73
      %p75 = scmp.eq.s32.totalorder %s74, 0
      %s77 = sadd.s32 %s76, 1
      %s78 = scalar_select %p75, %s76, %s77
      %p81 = pneg %p75
      %p82 = scmp.eq.s32.totalorder %s24, 1
      %p83 = por %p81, %p82
      %p84 = scmp.ne.s32.totalorder %s76, %s79
      %p85 = scmp.eq.s32.totalorder %s24, 0
      %p86 = por %p84, %p85
      %p87 = scmp.ne.s32.totalorder %s76, %s79
      %p88 = scmp.eq.s32.totalorder %s29, 1
      %p89 = por %p87, %p88
      %p90 = scmp.ne.s32.totalorder %s79, %s80
      %p91 = scmp.eq.s32.totalorder %s29, 0
      %p92 = por %p90, %p91
      %p93 = scmp.ne.s32.totalorder %s79, %s80
      %p94 = scmp.eq.s32.totalorder %s30, 1
      %p95 = por %p93, %p94
      %p97 = scmp.ne.s32.totalorder %s80, %s96
      %p98 = scmp.eq.s32.totalorder %s30, 0
      %p99 = por %p97, %p98
      %s100 = ssub.s32 %s31, %s43
      %s101 = ssub.s32 %s32, %s39
      %s102 = sor.u32 %s100, %s101
      %p103 = scmp.eq.s32.totalorder %s102, 0
      %s105 = sadd.s32 %s104, 1
      %s106 = scalar_select %p103, %s104, %s105
      %p109 = pneg %p103
      %p110 = scmp.eq.s32.totalorder %s24, 1
      %p111 = por %p109, %p110
      %p112 = scmp.ne.s32.totalorder %s104, %s107
      %p113 = scmp.eq.s32.totalorder %s24, 0
      %p114 = por %p112, %p113
      %p115 = scmp.ne.s32.totalorder %s104, %s107
      %p116 = scmp.eq.s32.totalorder %s29, 1
      %p117 = por %p115, %p116
      %p118 = scmp.ne.s32.totalorder %s107, %s108
      %p119 = scmp.eq.s32.totalorder %s29, 0
      %p120 = por %p118, %p119
      %p121 = scmp.ne.s32.totalorder %s107, %s108
      %p122 = scmp.eq.s32.totalorder %s30, 1
      %p123 = por %p121, %p122
      %p125 = scmp.ne.s32.totalorder %s108, %s124
      %p126 = scmp.eq.s32.totalorder %s30, 0
      %p127 = por %p125, %p126
      %s128 = ssub.s32 %s31, %s43
      %p129 = scmp.eq.s32.totalorder %s128, 0
      %s131 = sadd.s32 %s130, 1
      %s132 = scalar_select %p129, %s130, %s131
      %p135 = pneg %p129
      %p136 = scmp.eq.s32.totalorder %s24, 1
      %p137 = por %p135, %p136
      %p138 = scmp.ne.s32.totalorder %s130, %s133
      %p139 = scmp.eq.s32.totalorder %s24, 0
      %p140 = por %p138, %p139
      %p141 = scmp.ne.s32.totalorder %s130, %s133
      %p142 = scmp.eq.s32.totalorder %s29, 1
      %p143 = por %p141, %p142
      %p144 = scmp.ne.s32.totalorder %s133, %s134
      %p145 = scmp.eq.s32.totalorder %s29, 0
      %p146 = por %p144, %p145
      %p147 = scmp.ne.s32.totalorder %s133, %s134
      %p148 = scmp.eq.s32.totalorder %s30, 1
      %p149 = por %p147, %p148
      %p151 = scmp.ne.s32.totalorder %s134, %s150
      %p152 = scmp.eq.s32.totalorder %s30, 0
      %p153 = por %p151, %p152
      %s154 = ssub.s32 %s31, %s43
      %p155 = scmp.eq.s32.totalorder %s154, 0
      %s157 = sadd.s32 %s156, 1
      %s158 = scalar_select %p155, %s156, %s157
      %p161 = pneg %p155
      %p162 = scmp.eq.s32.totalorder %s24, 1
      %p163 = por %p161, %p162
      %p164 = scmp.ne.s32.totalorder %s156, %s159
      %p165 = scmp.eq.s32.totalorder %s24, 0
      %p166 = por %p164, %p165
      %p167 = scmp.ne.s32.totalorder %s156, %s159
      %p168 = scmp.eq.s32.totalorder %s29, 1
      %p169 = por %p167, %p168
      %p170 = scmp.ne.s32.totalorder %s159, %s160
      %p171 = scmp.eq.s32.totalorder %s29, 0
      %p172 = por %p170, %p171
      %p173 = scmp.ne.s32.totalorder %s159, %s160
      %p174 = scmp.eq.s32.totalorder %s30, 1
      %p175 = por %p173, %p174
      %p177 = scmp.ne.s32.totalorder %s160, %s176
      %p178 = scmp.eq.s32.totalorder %s30, 0
      %p179 = por %p177, %p178
      %s180 = ssub.s32 %s31, %s43
      %p181 = scmp.eq.s32.totalorder %s180, 0
      %s183 = sadd.s32 %s182, 1
      %s184 = scalar_select %p181, %s182, %s183
      %p187 = pneg %p181
      %p188 = scmp.eq.s32.totalorder %s24, 1
      %p189 = por %p187, %p188
      %p190 = scmp.ne.s32.totalorder %s182, %s185
      %p191 = scmp.eq.s32.totalorder %s24, 0
      %p192 = por %p190, %p191
      %p193 = scmp.ne.s32.totalorder %s182, %s185
      %p194 = scmp.eq.s32.totalorder %s29, 1
      %p195 = por %p193, %p194
      %p196 = scmp.ne.s32.totalorder %s185, %s186
      %p197 = scmp.eq.s32.totalorder %s29, 0
      %p198 = por %p196, %p197
      %p199 = scmp.ne.s32.totalorder %s185, %s186
      %p200 = scmp.eq.s32.totalorder %s30, 1
      %p201 = por %p199, %p200
      %p203 = scmp.ne.s32.totalorder %s186, %s202
      %p204 = scmp.eq.s32.totalorder %s30, 0
      %p205 = por %p203, %p204
      %p206 = scmp.le.s32.totalorder 1, %s24
      %p207 = scmp.lt.s32.totalorder %s24, 3
      %p208 = pnand %p206, %p207
      %p209 = pneg %p208
      // Predicated region
      $region9: #{tpu_custom_call.1} parent=5 // pred_check
        _
      $region10: #{tpu_custom_call.1} parent=5 // pred_check_branch
        %211 = sbr.rel (%p208) target = $region12
      $region11: #{tpu_custom_call.1} parent=5 // pred_region
        %s212 = ssub.s32 %s24, 1
      $region12: #{tpu_custom_call.1} parent=5 // pred_fallthru
        _
      %p213 = scmp.lt.s32.totalorder %s24, 2
      // Predicated region
      $region13: #{tpu_custom_call.1} parent=5 // pred_check
        %p214 = pneg %p213
      $region14: #{tpu_custom_call.1} parent=5 // pred_check_branch
        %216 = sbr.rel (%p214) target = $region16
      $region15: #{tpu_custom_call.1} parent=5 // pred_region
        // Predicated region
        $region17: #{tpu_custom_call.1} parent=15 // pred_check
          %p217 = pneg %p58
        $region18: #{tpu_custom_call.1} parent=15 // pred_check_branch
          %219 = sbr.rel (%p217) target = $region20
        $region19: #{tpu_custom_call.1} parent=15 // pred_region
          %s220 = sand.u32 %s48, 1
          %s221 = scalar_lea.sflag [#allocation3], %s220
          %s222 = sand.u32 %s48, 1
          %s223 = smul.addr %s222, 8
          %s224 = scalar_lea.vmem [#allocation2], %s223
          %s226 = ssub.s32 128, 128
          %227 = vsyncadd %s221, %s226
          %s228 = smul.addr %s32, 2
          %s229 = smul.addr %s31, 2
          %s230 = sadd.s32 %s228, %s229
          %s231 = smul.addr %s230, 64
          %s232 = scalar_lea.hbm %s0, %s231
          %s234 = sshll.u32 %s224, 4
          %s235 = int_to_ptr.vmem [resolvable:$true] %s234
          %237 = dma.hbm_to_vmem [thread:$0]  %s232, 128, %s235, %s221
        $region20: #{tpu_custom_call.1} parent=15 // pred_fallthru
          _
        // Predicated region
        $region21: #{tpu_custom_call.1} parent=15 // pred_check
          %p238 = pneg %p86
        $region22: #{tpu_custom_call.1} parent=15 // pred_check_branch
          %240 = sbr.rel (%p238) target = $region24
        $region23: #{tpu_custom_call.1} parent=15 // pred_region
          %s241 = sand.u32 %s24, 1
          %s242 = scalar_lea.sflag [#allocation6], %s241
          %s243 = sand.u32 %s76, 1
          %s244 = smul.addr %s243, 8
          %s245 = scalar_lea.vmem [#allocation5], %s244
          %s247 = ssub.s32 128, 128
          %248 = vsyncadd %s242, %s247
          %s249 = smul.addr %s32, 2
          %s250 = smul.addr %s31, 2
          %s251 = sadd.s32 %s249, %s250
          %s252 = smul.addr %s251, 64
          %s253 = scalar_lea.hbm %s1, %s252
          %s255 = sshll.u32 %s245, 4
          %s256 = int_to_ptr.vmem [resolvable:$true] %s255
          %258 = dma.hbm_to_vmem [thread:$0]  %s253, 128, %s256, %s242
        $region24: #{tpu_custom_call.1} parent=15 // pred_fallthru
          _
        // Predicated region
        $region25: #{tpu_custom_call.1} parent=15 // pred_check
          %p259 = pneg %p114
        $region26: #{tpu_custom_call.1} parent=15 // pred_check_branch
          %261 = sbr.rel (%p259) target = $region28
        $region27: #{tpu_custom_call.1} parent=15 // pred_region
          %s262 = sand.u32 %s24, 1
          %s263 = scalar_lea.sflag [#allocation6], %s262
          %s264 = sand.u32 %s104, 1
          %s265 = smul.addr %s264, 8
          %s266 = scalar_lea.vmem [#allocation7], %s265
          %s268 = ssub.s32 128, 128
          %269 = vsyncadd %s263, %s268
          %s270 = smul.addr %s32, 2
          %s271 = smul.addr %s31, 2
          %s272 = sadd.s32 %s270, %s271
          %s273 = smul.addr %s272, 64
          %s274 = scalar_lea.hbm %s2, %s273
          %s276 = sshll.u32 %s266, 4
          %s277 = int_to_ptr.vmem [resolvable:$true] %s276
          %279 = dma.hbm_to_vmem [thread:$0]  %s274, 128, %s277, %s263
        $region28: #{tpu_custom_call.1} parent=15 // pred_fallthru
          _
        // Predicated region
        $region29: #{tpu_custom_call.1} parent=15 // pred_check
          %p280 = pneg %p140
        $region30: #{tpu_custom_call.1} parent=15 // pred_check_branch
          %282 = sbr.rel (%p280) target = $region32
        $region31: #{tpu_custom_call.1} parent=15 // pred_region
          %p283 = scmp.lt.s32.totalorder %s31, 1
          %s284 = scalar_select %p283, %s31, 1
          %s285 = smul.addr %s284, 2
          %s286 = scalar_lea.vmem %s3, %s285
        $region32: #{tpu_custom_call.1} parent=15 // pred_fallthru
          _
      $region16: #{tpu_custom_call.1} parent=5 // pred_fallthru
        _
      %p287 = scmp.le.s32.totalorder 1, %s24
      %p288 = scmp.lt.s32.totalorder %s24, 3
      %p289 = pnand %p287, %p288
      %p290 = pneg %p289
      // Predicated region
      $region33: #{tpu_custom_call.1} parent=5 // pred_check
        _
      $region34: #{tpu_custom_call.1} parent=5 // pred_check_branch
        %292 = sbr.rel (%p289) target = $region36
      $region35: #{tpu_custom_call.1} parent=5 // pred_region
        %s293 = ssub.s32 %s24, 1
        %s294 = sand.u32 %s51, 1
        %s295 = scalar_lea.sflag [#allocation3], %s294
        %s296 = sand.u32 %s51, 1
        %s297 = smul.addr %s296, 8
        %s298 = scalar_lea.vmem [#allocation2], %s297
        // Predicated region
        $region37: #{tpu_custom_call.1} parent=35 // pred_check
          %p299 = pneg %p64
        $region38: #{tpu_custom_call.1} parent=35 // pred_check_branch
          %301 = sbr.rel (%p299) target = $region40
        $region39: #{tpu_custom_call.1} parent=35 // pred_region
          %302 = dma.done %s295, 128
        $region40: #{tpu_custom_call.1} parent=35 // pred_fallthru
          _
        %s303 = sand.u32 %s29, 1
        %s304 = scalar_lea.sflag [#allocation6], %s303
        %s305 = sand.u32 %s79, 1
        %s306 = smul.addr %s305, 8
        %s307 = scalar_lea.vmem [#allocation5], %s306
        // Predicated region
        $region41: #{tpu_custom_call.1} parent=35 // pred_check
          %p308 = pneg %p92
        $region42: #{tpu_custom_call.1} parent=35 // pred_check_branch
          %310 = sbr.rel (%p308) target = $region44
        $region43: #{tpu_custom_call.1} parent=35 // pred_region
          %311 = dma.done %s304, 128
        $region44: #{tpu_custom_call.1} parent=35 // pred_fallthru
          _
        %s312 = sand.u32 %s29, 1
        %s313 = scalar_lea.sflag [#allocation6], %s312
        %s314 = sand.u32 %s107, 1
        %s315 = smul.addr %s314, 8
        %s316 = scalar_lea.vmem [#allocation7], %s315
        // Predicated region
        $region45: #{tpu_custom_call.1} parent=35 // pred_check
          %p317 = pneg %p120
        $region46: #{tpu_custom_call.1} parent=35 // pred_check_branch
          %319 = sbr.rel (%p317) target = $region48
        $region47: #{tpu_custom_call.1} parent=35 // pred_region
          %320 = dma.done %s313, 128
        $region48: #{tpu_custom_call.1} parent=35 // pred_fallthru
          _
        %s321 = sand.u32 %s51, 1
        %s322 = scalar_lea.sflag [#allocation3], %s321
        %s323 = sand.u32 %s51, 1
        %s324 = smul.addr %s323, 8
        %s325 = scalar_lea.vmem [#allocation2], %s324
        %p326 = pneg %p64
        %p327 = pneg %p61
        %s328 = sand.u32 %s29, 1
        %s329 = scalar_lea.sflag [#allocation6], %s328
        %s330 = sand.u32 %s79, 1
        %s331 = smul.addr %s330, 8
        %s332 = scalar_lea.vmem [#allocation5], %s331
        %p333 = pneg %p92
        %p334 = pneg %p89
        %s335 = sand.u32 %s29, 1
        %s336 = scalar_lea.sflag [#allocation6], %s335
        %s337 = sand.u32 %s107, 1
        %s338 = smul.addr %s337, 8
        %s339 = scalar_lea.vmem [#allocation7], %s338
        %p340 = pneg %p120
        %p341 = pneg %p117
        %p342 = scmp.lt.s32.totalorder %s33, 1
        %s343 = scalar_select %p342, %s33, 1
        %s344 = smul.addr %s343, 2
        %s345 = scalar_lea.vmem %s3, %s344
        %p346 = pneg %p146
        %p347 = pneg %p143
        %p348 = pneg %p172
        %p349 = pneg %p169
        %s350 = sand.u32 %s159, 1
        %s351 = scalar_lea.sflag [#allocation4], %s350
        %s352 = sand.u32 %s159, 1
        %s353 = smul.addr %s352, 8
        %s354 = scalar_lea.vmem [#allocation8], %s353
        %p355 = pneg %p198
        %p356 = pneg %p195
        %s357 = sand.u32 %s185, 1
        %s358 = scalar_lea.sflag [#allocation10], %s357
        %s359 = sand.u32 %s185, 1
        %s360 = smul.addr %s359, 8
        %s361 = scalar_lea.vmem [#allocation9], %s360
        %p362 = scmp.lt.s32.totalorder %s33, 1
        %s363 = scalar_select %p362, %s33, 1
        %s364 = smul.addr %s363, 2
        %s365 = scalar_lea.vmem %s3, %s364
        %p366 = scmp.eq.s32.totalorder %s34, 0
        // Predicated region
        $region49: #{tpu_custom_call.1} parent=35 // pred_check
          %p367 = pneg %p366
        $region50: #{tpu_custom_call.1} parent=35 // pred_check_branch
          %369 = sbr.rel (%p367) target = $region52
        $region51: #{tpu_custom_call.1} parent=35 // pred_region
          %370 = vst [vmem:[%s354] sm:$0xff] 0.0
          %371 = vst [vmem:[%s361] sm:$0xff] 0.0
        $region52: #{tpu_custom_call.1} parent=35 // pred_fallthru
          _
        %v372 = vld [vmem:[%s298] sm:$0xff]
        %v373 = vld [vmem:[%s307] sm:$0xff]
        %v374 = vld [vmem:[%s365] sm:$0x3]
        %vm375 = vcmp.ge.f32.partialorder %v374, 10.0
        %vm376 = vcmp.le.f32.partialorder %v374, 40.0
        %vm377 = vmand %vm375, %vm376
        %vm378 = vcmp.ge.f32.partialorder %v372, 0.0
        %v379 = vsel %vm377, 1, 0
        %v380 = vlaneseq
        %v381 = vshrl.u32 %v380, 7
        %v382 = vsub.s32 0, %v381
        %v383 = vrot.slane %v379, %v382
        %v384 = vlaneseq
        %v385 = vshrl.u32 %v384, 7
        %v386 = vsub.s32 1, %v385
        %v387 = vrot.slane %v379, %v386
        %vm388 = vcmp.eq.s32.totalorder %v383, 1
        %vm389 = vcmp.eq.s32.totalorder %v387, 1
        %v390 = vsel %vm378, 1, 0
        %v391 = vcombine.high %v390, %v390
        %vm392 = vcmp.ne.s32.totalorder %v391, 0
        %vm393 = vmand %vm388, %vm378
        %vm394 = vmand %vm389, %vm392
        %v395 = vld [vmem:[%s316] sm:$0xff]
        %vm396 = vcmp.ne.f32.partialorder %v395, 0.0
        %v397 = vsel %vm396, 1, 0
        %v398 = vcombine.high %v397, %v397
        %vm399 = vcmp.ne.s32.totalorder %v398, 0
        %vm400 = vmand %vm393, %vm396
        %vm401 = vmand %vm394, %vm399
        %vm402 = vcmp.ne.f32.partialorder %v373, %v373
        %v403 = vsel %vm402, 0.0, %v373
        %v404 = vsub.f32 %v372, %v403
        %v406 = vcombine.high %v404, %v404
        %v408 = vsel %vm400, %v404, 0.0
        %v409 = vsel %vm401, %v406, 0.0
        %v410 = vmul.f32 %v408, %v408
        %v411 = vmul.f32 %v409, %v409
        %v412 = vsel %vm400, 1, 0
        %v413 = vsel %vm401, 1, 0
        %v414 = vcvt.s32.f32 %v412
        %v415 = vcvt.s32.f32 %v413
        %v416 = vld [vmem:[%s354] sm:$0xff]
        %v419 = vcombine.low %v410, %v411
        %v421 = vadd.f32 %v416, %v419
        %422 = vst [vmem:[%s354] sm:$0xff] %v421
        %v423 = vld [vmem:[%s361] sm:$0xff]
        %v426 = vcombine.low %v414, %v415
        %v428 = vadd.f32 %v423, %v426
        %429 = vst [vmem:[%s361] sm:$0xff] %v428
        %s430 = sand.u32 %s159, 1
        %s431 = scalar_lea.sflag [#allocation4], %s430
        %s432 = sand.u32 %s159, 1
        %s433 = smul.addr %s432, 8
        %s434 = scalar_lea.vmem [#allocation8], %s433
        %s435 = sand.u32 %s185, 1
        %s436 = scalar_lea.sflag [#allocation10], %s435
        %s437 = sand.u32 %s185, 1
        %s438 = smul.addr %s437, 8
        %s439 = scalar_lea.vmem [#allocation9], %s438
        // Predicated region
        $region53: #{tpu_custom_call.1} parent=35 // pred_check
          %p440 = pneg %p169
        $region54: #{tpu_custom_call.1} parent=35 // pred_check_branch
          %442 = sbr.rel (%p440) target = $region56
        $region55: #{tpu_custom_call.1} parent=35 // pred_region
          %s444 = ssub.s32 128, 128
          %445 = vsyncadd %s431, %s444
          %s446 = smul.addr %s33, 2
          %s447 = smul.addr %s446, 64
          %s448 = scalar_lea.hbm %s4, %s447
          %s450 = sshll.u32 %s434, 4
          %s451 = int_to_ptr.vmem [resolvable:$true] %s450
          %453 = dma.vmem_to_hbm [thread:$0]  %s451, 128, %s448, %s431
        $region56: #{tpu_custom_call.1} parent=35 // pred_fallthru
          _
        // Predicated region
        $region57: #{tpu_custom_call.1} parent=35 // pred_check
          %p454 = pneg %p195
        $region58: #{tpu_custom_call.1} parent=35 // pred_check_branch
          %456 = sbr.rel (%p454) target = $region60
        $region59: #{tpu_custom_call.1} parent=35 // pred_region
          %s458 = ssub.s32 128, 128
          %459 = vsyncadd %s436, %s458
          %s460 = smul.addr %s33, 2
          %s461 = smul.addr %s460, 64
          %s462 = scalar_lea.hbm %s5, %s461
          %s464 = sshll.u32 %s439, 4
          %s465 = int_to_ptr.vmem [resolvable:$true] %s464
          %467 = dma.vmem_to_hbm [thread:$0]  %s465, 128, %s462, %s436
        $region60: #{tpu_custom_call.1} parent=35 // pred_fallthru
          _
      $region36: #{tpu_custom_call.1} parent=5 // pred_fallthru
        _
      %p468 = scmp.le.s32.totalorder 2, %s24
      // Predicated region
      $region61: #{tpu_custom_call.1} parent=5 // pred_check
        %p469 = pneg %p468
      $region62: #{tpu_custom_call.1} parent=5 // pred_check_branch
        %471 = sbr.rel (%p469) target = $region64
      $region63: #{tpu_custom_call.1} parent=5 // pred_region
        %s472 = ssub.s32 %s24, 2
        // Predicated region
        $region65: #{tpu_custom_call.1} parent=63 // pred_check
          %p473 = pneg %p175
        $region66: #{tpu_custom_call.1} parent=63 // pred_check_branch
          %475 = sbr.rel (%p473) target = $region68
        $region67: #{tpu_custom_call.1} parent=63 // pred_region
          %s476 = sand.u32 %s160, 1
          %s477 = scalar_lea.sflag [#allocation4], %s476
          %s478 = sand.u32 %s160, 1
          %s479 = smul.addr %s478, 8
          %s480 = scalar_lea.vmem [#allocation8], %s479
          %481 = dma.done %s477, 128
        $region68: #{tpu_custom_call.1} parent=63 // pred_fallthru
          _
        // Predicated region
        $region69: #{tpu_custom_call.1} parent=63 // pred_check
          %p482 = pneg %p201
        $region70: #{tpu_custom_call.1} parent=63 // pred_check_branch
          %484 = sbr.rel (%p482) target = $region72
        $region71: #{tpu_custom_call.1} parent=63 // pred_region
          %s485 = sand.u32 %s186, 1
          %s486 = scalar_lea.sflag [#allocation10], %s485
          %s487 = sand.u32 %s186, 1
          %s488 = smul.addr %s487, 8
          %s489 = scalar_lea.vmem [#allocation9], %s488
          %490 = dma.done %s486, 128
        $region72: #{tpu_custom_call.1} parent=63 // pred_fallthru
          _
      $region64: #{tpu_custom_call.1} parent=5 // pred_fallthru
        _
    $region6: #{tpu_custom_call.1} parent=1 // loop_footer
      %s28 = sadd.s32 1, %s24
    $region7: #{tpu_custom_call.1} parent=1 // loop_footer_branch
      %23 = sbr.rel target = $region3
    $region8: #{tpu_custom_call.1} parent=1 // loop_exit
      _
    %491 = vsyncpa [#allocation3], 1
    %s492 = scalar_lea.sflag [#allocation3], 1
    %493 = vsyncpa %s492, 1
    %494 = vsyncpa [#allocation6], 1
    %s495 = scalar_lea.sflag [#allocation6], 1
    %496 = vsyncpa %s495, 1
    %497 = vsyncpa [#allocation4], 1
    %s498 = scalar_lea.sflag [#allocation4], 1
    %499 = vsyncpa %s498, 1
    %500 = vsyncpa [#allocation10], 1
    %s501 = scalar_lea.sflag [#allocation10], 1
    %502 = vsyncpa %s501, 1

</llo_original>
